<compile_context>
chip_gen: v6e
topology: v6e:2x2x1
jax: 0.10.0
libtpu: 0.0.40
codegen_flags: <defaults>
</compile_context>

<pallas_src>
import functools
import math

import numpy as np
import jax
import jax.numpy as jnp
from jax.experimental import pallas as pl
from jax.experimental.pallas import tpu as pltpu


def _round_up(x, m):
    return (x + m - 1) // m * m


def _tpu_generation():
    try:
        kind = jax.devices()[0].device_kind.lower()
    except Exception:
        return 0
    for g in (7, 6, 5, 4):
        if "v%d" % g in kind:
            return g
    return 0


def _pick_sub_block(P, groupsize):
    """Largest sub-block that divides both P and groupsize (so every
    (shift, sub-block) slab lies inside a single quantization group)."""
    sb = math.gcd(P, groupsize)
    while sb > 256 and sb % 2 == 0:
        sb //= 2
    return sb


def prepare_qweight_for_tpu(qweight, bits, infeatures):
    """One-time repack of the GPTQ int32 qweight so that bit-shift j of packed
    row p holds original K row j*P + p (contiguous per-shift K blocks).  Do this
    once at checkpoint-load time and cache the result; it replaces the per-call
    de-interleave of the activations."""
    elems = 32 // bits
    mask = (1 << bits) - 1
    P = infeatures // elems
    assert qweight.shape[0] == P
    sh = jnp.arange(elems, dtype=jnp.int32) * bits
    w = ((qweight[:, None, :] >> sh[None, :, None]) & mask).astype(jnp.uint32)
    w = w.reshape(infeatures, -1)          # row r = original K row r
    w = w.reshape(elems, P, -1)            # [j, p] = original K row j*P + p
    packed = jnp.zeros((P, qweight.shape[-1]), jnp.uint32)
    for j in range(elems):
        packed = packed | (w[j] << (j * bits))
    return jax.lax.bitcast_convert_type(packed, jnp.int32)


def _dequant_slab(qblk, s_ref, sz_ref, j, bits, group, compute_dtype):
    """Dequantize bit-shift j of a packed sub-block; `group` is static."""
    mask = (1 << bits) - 1
    wj = ((qblk >> (j * bits)) & mask).astype(compute_dtype)
    s_row = s_ref[pl.ds(group, 1), :].astype(compute_dtype)     # (1, TN)
    sz_row = sz_ref[pl.ds(group, 1), :].astype(compute_dtype)   # (1, TN)
    return wj * s_row - sz_row


def _qlinear_scratch_kernel(*refs, bits, sub_block, groupsize, compute_dtype,
                            has_bias):
    """Prefill path: dequant the (K, TN) weight tile once per N tile (m == 0)
    into persistent VMEM scratch, then MXU matmul + bias per (m, n) tile."""
    if has_bias:
        x_ref, qw_ref, s_ref, sz_ref, bias_ref, o_ref, w_ref = refs
    else:
        x_ref, qw_ref, s_ref, sz_ref, o_ref, w_ref = refs
        bias_ref = None

    elems = 32 // bits
    P = qw_ref.shape[0]

    @pl.when(pl.program_id(1) == 0)
    def _dequant():
        # Sub-block outer / shift inner: each packed sub-block is loaded from
        # VMEM once and reused across all `elems` shifts.
        for b in range(P // sub_block):
            qblk = qw_ref[pl.ds(b * sub_block, sub_block), :]
            for j in range(elems):
                row0 = j * P + b * sub_block          # original K row offset
                g = row0 // groupsize                 # static group index
                slab = _dequant_slab(qblk, s_ref, sz_ref, j, bits, g,
                                     compute_dtype)
                w_ref[pl.ds(row0, sub_block), :] = slab.astype(w_ref.dtype)

    x = x_ref[...]
    if x.dtype != w_ref.dtype:
        x = x.astype(w_ref.dtype)
    acc = jnp.dot(x, w_ref[...], preferred_element_type=jnp.float32)
    if has_bias:
        acc = acc + bias_ref[...]
    o_ref[...] = acc.astype(o_ref.dtype)


def _qlinear_decode_kernel(*refs, bits, sub_block, groupsize, compute_dtype,
                           has_bias):
    """Decode path (single small M tile): fused dequant + matmul per slab, f32
    accumulation; no scratch store/reload and no head-of-tile dequant bubble."""
    if has_bias:
        x_ref, qw_ref, s_ref, sz_ref, bias_ref, o_ref = refs
    else:
        x_ref, qw_ref, s_ref, sz_ref, o_ref = refs
        bias_ref = None

    elems = 32 // bits
    P = qw_ref.shape[0]
    TM = x_ref.shape[0]
    TN = o_ref.shape[1]

    acc = jnp.zeros((TM, TN), jnp.float32)
    for b in range(P // sub_block):
        qblk = qw_ref[pl.ds(b * sub_block, sub_block), :]
        for j in range(elems):
            row0 = j * P + b * sub_block
            g = row0 // groupsize
            slab = _dequant_slab(qblk, s_ref, sz_ref, j, bits, g, compute_dtype)
            xj = x_ref[:, pl.ds(row0, sub_block)]
            if xj.dtype != slab.dtype:
                xj = xj.astype(slab.dtype)
            acc = acc + jnp.dot(xj, slab, preferred_element_type=jnp.float32)
    if has_bias:
        acc = acc + bias_ref[...]
    o_ref[...] = acc.astype(o_ref.dtype)


def quant_linear_forward(x, qweight, scales, qzeros, bias, *,
                         bits, groupsize, infeatures, outfeatures,
                         qweight_prepacked=False, max_tm=256):
    assert bits in (2, 4, 8), "this Pallas port supports the packed 2/4/8-bit path"
    elems = 32 // bits
    mask = (1 << bits) - 1
    assert infeatures % elems == 0
    assert outfeatures % elems == 0
    assert infeatures % groupsize == 0, "infeatures must be a multiple of groupsize"
    # TODO(synk): act_order (permuted g_idx) and load_from_autogptq=1 (zeros+1)
    # are not implemented; this is the module-default g_idx = i // groupsize path.

    G = infeatures // groupsize
    P = infeatures // elems
    assert scales.shape == (G, outfeatures)

    if not qweight_prepacked:
        # Cacheable preprocessing; call prepare_qweight_for_tpu once at load time
        # in real use to keep it off the forward path.
        qweight = prepare_qweight_for_tpu(qweight, bits, infeatures)

    gen = _tpu_generation()

    orig_lead = x.shape[:-1]
    M = int(np.prod(orig_lead)) if orig_lead else 1
    # x is re-streamed once per N tile -> ship bf16 to halve that HBM stream.
    x2 = x.reshape(M, infeatures).astype(jnp.bfloat16)

    # Tiny (G x N) parameter glue only: unpack zeros and fold into per-group
    # scale / scale*zero tables (no (P, N) materialization).
    shifts = (jnp.arange(elems, dtype=jnp.int32) * bits)[None, None, :]
    zeros = ((qzeros[:, :, None] >> shifts) & mask).reshape(G, outfeatures)
    s_g = scales.astype(jnp.float32)                 # (G, N)
    sz_g = zeros.astype(jnp.float32) * s_g           # (G, N)

    has_bias = bias is not None
    if has_bias:
        bias_f32 = bias.reshape(1, outfeatures).astype(jnp.float32)

    # --- tiling ---
    TM = min(max_tm, _round_up(M, 16))               # bf16 sublane packing: 16
    M_pad = _round_up(M, TM)
    if M_pad != M:
        x2 = jnp.pad(x2, ((0, M_pad - M), (0, 0)))

    sub_block = _pick_sub_block(P, groupsize)
    # bf16 scratch needs 16-row aligned slab writes; otherwise fall back to f32.
    bf16_ok = (P % 16 == 0) and (sub_block % 16 == 0)
    store_dtype = jnp.bfloat16 if bf16_ok else jnp.float32
    # bf16 dequant FMA on v6e/v7x (bf16 VALU), f32 on v5e / unknown / 8-bit.
    bf16_fma = (gen >= 6) and (bits <= 4)

    use_decode = (M_pad == TM) and (TM <= 32)
    if use_decode:
        compute_dtype = jnp.bfloat16 if bf16_fma else jnp.float32
    else:
        compute_dtype = jnp.bfloat16 if (bf16_fma and bf16_ok) else jnp.float32

    out_itemsize = jnp.dtype(x.dtype).itemsize
    store_itemsize = jnp.dtype(store_dtype).itemsize
    if gen == 7:
        vmem_cap = 56 * 1024 * 1024      # leave headroom under v7x's 64 MiB
    elif gen in (5, 6):
        vmem_cap = 100 * 1024 * 1024     # 128 MiB physical
    else:
        vmem_cap = 64 * 1024 * 1024

    def footprint(tn):
        fp = 2 * TM * infeatures * 2               # x bf16, double-buffered
        fp += 2 * P * tn * 4                       # packed weights
        fp += 2 * 2 * G * tn * 4                   # scales + scale*zero
        if has_bias:
            fp += 2 * tn * 4
        fp += 2 * TM * tn * out_itemsize           # output tile
        if not use_decode:
            fp += infeatures * tn * store_itemsize  # persistent dequant scratch
        return fp

    cands = [c for c in (1024, 512, 256, 128) if outfeatures % c == 0]
    TN = outfeatures
    for cand in cands:
        if footprint(cand) <= vmem_cap - 8 * 1024 * 1024:
            TN = cand
            break
    else:
        if cands:
            TN = cands[-1]
    # TODO(synk): for very large infeatures, add K tiling (3-D grid with an f32
    # accumulator scratch) so the per-N-tile dequant slab stays inside VMEM on v7x.

    common = dict(bits=bits, sub_block=sub_block, groupsize=groupsize,
                  compute_dtype=compute_dtype, has_bias=has_bias)
    inputs = [x2, qweight, s_g, sz_g] + ([bias_f32] if has_bias else [])

    if use_decode:
        in_specs = [
            pl.BlockSpec((TM, infeatures), lambda n: (0, 0)),
            pl.BlockSpec((P, TN), lambda n: (0, n)),
            pl.BlockSpec((G, TN), lambda n: (0, n)),
            pl.BlockSpec((G, TN), lambda n: (0, n)),
        ]
        if has_bias:
            in_specs.append(pl.BlockSpec((1, TN), lambda n: (0, n)))
        out = pl.pallas_call(
            functools.partial(_qlinear_decode_kernel, **common),
            out_shape=jax.ShapeDtypeStruct((M_pad, outfeatures), x.dtype),
            grid=(outfeatures // TN,),
            in_specs=in_specs,
            out_specs=pl.BlockSpec((TM, TN), lambda n: (0, n)),
            compiler_params=pltpu.CompilerParams(
                dimension_semantics=("parallel",),
                vmem_limit_bytes=vmem_cap,
            ),
        )(*inputs)
    else:
        in_specs = [
            pl.BlockSpec((TM, infeatures), lambda n, m: (m, 0)),
            pl.BlockSpec((P, TN), lambda n, m: (0, n)),
            pl.BlockSpec((G, TN), lambda n, m: (0, n)),
            pl.BlockSpec((G, TN), lambda n, m: (0, n)),
        ]
        if has_bias:
            in_specs.append(pl.BlockSpec((1, TN), lambda n, m: (0, n)))
        out = pl.pallas_call(
            functools.partial(_qlinear_scratch_kernel, **common),
            out_shape=jax.ShapeDtypeStruct((M_pad, outfeatures), x.dtype),
            grid=(outfeatures // TN, M_pad // TM),        # N outer, M inner
            in_specs=in_specs,
            out_specs=pl.BlockSpec((TM, TN), lambda n, m: (m, n)),
            scratch_shapes=[pltpu.VMEM((infeatures, TN), store_dtype)],
            compiler_params=pltpu.CompilerParams(
                dimension_semantics=("parallel", "arbitrary"),
                vmem_limit_bytes=vmem_cap,
            ),
        )(*inputs)

    if M_pad != M:
        out = out[:M]
    return out.reshape(orig_lead + (outfeatures,))


def _reference_forward(x, qweight, scales, qzeros, bias, *, bits, groupsize,
                       infeatures, outfeatures, weight_dtype=jnp.float32,
                       x_cast=None):
    """Pure-JAX transcription of DequantAndUnpack + matmul (+ bias)."""
    elems = 32 // bits
    mask = (1 << bits) - 1
    sh = jnp.arange(elems, dtype=jnp.int32) * bits
    w = ((qweight[:, None, :] >> sh[None, :, None]) & mask).astype(jnp.float32)
    w = w.reshape(infeatures, outfeatures)
    z = ((qzeros[:, :, None] >> sh[None, None, :]) & mask).astype(jnp.float32)
    z = z.reshape(-1, outfeatures)
    s = scales.astype(jnp.float32)
    gi = jnp.arange(infeatures) // groupsize
    wd = (s[gi] * w - (z * s)[gi]).astype(weight_dtype)
    xb = x.reshape(-1, infeatures)
    if x_cast is not None:
        xb = xb.astype(x_cast)
    out = jnp.dot(xb.astype(weight_dtype), wd, preferred_element_type=jnp.float32)
    if bias is not None:
        out = out + bias.astype(jnp.float32)
    return out.reshape(x.shape[:-1] + (outfeatures,)).astype(x.dtype)


def _make_test_case(key, *, bits, groupsize, infeatures, outfeatures, x_shape,
                    with_bias):
    elems = 32 // bits
    mask = (1 << bits) - 1
    G = infeatures // groupsize
    P = infeatures // elems
    k1, k2, k3, k4, k5 = jax.random.split(key, 5)

    w_int = np.asarray(jax.random.randint(k1, (infeatures, outfeatures), 0,
                                          mask + 1, dtype=jnp.int32))
    z_int = np.asarray(jax.random.randint(k2, (G, outfeatures), 0, mask + 1,
                                          dtype=jnp.int32))
    scales = (jax.random.uniform(k3, (G, outfeatures), jnp.float32) * 0.02 + 1e-3
              ).astype(jnp.float16)
    bias = None
    if with_bias:
        bias = (jax.random.normal(k4, (outfeatures,), jnp.float32) * 0.1
                ).astype(jnp.float16)
    x = jax.random.normal(k5, x_shape, jnp.float32)

    # Pack qweight exactly like the torch module: word p, shift j*bits holds
    # K row p*elems + j.
    w_r = w_int.reshape(P, elems, outfeatures)
    qw_np = np.zeros((P, outfeatures), dtype=np.uint32)
    for j in range(elems):
        qw_np |= w_r[:, j, :].astype(np.uint32) << (bits * j)
    qweight = jnp.asarray(qw_np.view(np.int32))

    # Pack qzeros: word c, shift j*bits holds output column c*elems + j.
    z_r = z_int.reshape(G, outfeatures // elems, elems)
    qz_np = np.zeros((G, outfeatures // elems), dtype=np.uint32)
    for j in range(elems):
        qz_np |= z_r[:, :, j].astype(np.uint32) << (bits * j)
    qzeros = jnp.asarray(qz_np.view(np.int32))
    return x, qweight, scales, qzeros, bias


if __name__ == "__main__":
    key = jax.random.PRNGKey(0)
    kA, kB = jax.random.split(key)

    # --- Case A: decode-shaped (M=16) -> fused dequant+matmul path, with bias.
    cfgA = dict(bits=4, groupsize=16, infeatures=64, outfeatures=128)
    xA, qwA, sA, qzA, bA = _make_test_case(kA, x_shape=(2, 8, 64),
                                           with_bias=True, **cfgA)
    # One-time (load-time) repack of the packed weights.
    qwA_packed = prepare_qweight_for_tpu(qwA, cfgA["bits"], cfgA["infeatures"])
    outA = quant_linear_forward(xA, qwA_packed, sA, qzA, bA,
                                qweight_prepacked=True, **cfgA)
    outA = jax.block_until_ready(outA)
    assert outA.shape == (2, 8, 128)
    refA_t = _reference_forward(xA, qwA, sA, qzA, bA,
                                weight_dtype=jnp.bfloat16, x_cast=jnp.bfloat16,
                                **cfgA)
    np.testing.assert_allclose(np.asarray(outA), np.asarray(refA_t),
                               rtol=3e-2, atol=3e-2)
    refA_f = _reference_forward(xA, qwA, sA, qzA, bA, **cfgA)
    np.testing.assert_allclose(np.asarray(outA), np.asarray(refA_f),
                               rtol=5e-2, atol=5e-2)

    # --- Case B: prefill-shaped (M=128, TM forced to 64 -> 2 M tiles), 8-bit,
    # no bias; exercises the persistent dequant-scratch path and inline repack.
    cfgB = dict(bits=8, groupsize=16, infeatures=64, outfeatures=384)
    xB, qwB, sB, qzB, bB = _make_test_case(kB, x_shape=(2, 64, 64),
                                           with_bias=False, **cfgB)
    outB = quant_linear_forward(xB, qwB, sB, qzB, bB, max_tm=64, **cfgB)
    outB = jax.block_until_ready(outB)
    assert outB.shape == (2, 64, 384)
    refB_t = _reference_forward(xB, qwB, sB, qzB, bB,
                                weight_dtype=jnp.bfloat16, x_cast=jnp.bfloat16,
                                **cfgB)
    np.testing.assert_allclose(np.asarray(outB), np.asarray(refB_t),
                               rtol=2e-2, atol=2e-2)
    refB_f = _reference_forward(xB, qwB, sB, qzB, bB, **cfgB)
    np.testing.assert_allclose(np.asarray(outB), np.asarray(refB_f),
                               rtol=5e-2, atol=3e-1)

    print("KERNEL_OK")
</pallas_src>

<mosaic_0001>
module attributes {stable_mosaic.version = 11 : i64} {
  func.func @_qlinear_decode_kernel(%arg0: i32, %arg1: memref<16x64xbf16, #tpu.memory_space<vmem>>, %arg2: memref<8x128xi32, #tpu.memory_space<vmem>>, %arg3: memref<4x128xf32, #tpu.memory_space<vmem>>, %arg4: memref<4x128xf32, #tpu.memory_space<vmem>>, %arg5: memref<1x128xf32, #tpu.memory_space<vmem>>, %arg6: memref<16x128xf32, #tpu.memory_space<vmem>>) attributes {dimension_semantics = [#tpu.dimension_semantics<parallel>], iteration_bounds = array<i64: 1>, scalar_prefetch = 0 : i64, scratch_operands = 0 : i64, tpu.core_type = #tpu.core_type<tc>, window_params = [{pipeline_mode = #tpu.pipeline_mode<synchronous>, transform_indices = @transform_0, window_bounds = array<i64: 16, 64>}, {transform_indices = @transform_1, window_bounds = array<i64: 8, 128>}, {transform_indices = @transform_2, window_bounds = array<i64: 4, 128>}, {transform_indices = @transform_3, window_bounds = array<i64: 4, 128>}, {transform_indices = @transform_4, window_bounds = array<i64: 1, 128>}, {transform_indices = @transform_5, window_bounds = array<i64: 16, 128>}]} {
    %cst = arith.constant 0.000000e+00 : f32
    %0 = vector.broadcast %cst : f32 to vector<16x128xf32>
    %c0 = arith.constant 0 : index
    %c0_0 = arith.constant 0 : index
    %1 = vector.load %arg2[%c0, %c0_0] : memref<8x128xi32, #tpu.memory_space<vmem>>, vector<8x128xi32>
    %c0_i32 = arith.constant 0 : i32
    %2 = vector.broadcast %c0_i32 : i32 to vector<8x128xi32>
    %3 = arith.shrsi %1, %2 : vector<8x128xi32>
    %c15_i32 = arith.constant 15 : i32
    %4 = vector.broadcast %c15_i32 : i32 to vector<8x128xi32>
    %5 = arith.andi %3, %4 : vector<8x128xi32>
    %6 = arith.sitofp %5 : vector<8x128xi32> to vector<8x128xf32>
    %c0_1 = arith.constant 0 : index
    %c0_2 = arith.constant 0 : index
    %7 = vector.load %arg3[%c0_1, %c0_2] : memref<4x128xf32, #tpu.memory_space<vmem>>, vector<1x128xf32>
    %c0_3 = arith.constant 0 : index
    %c0_4 = arith.constant 0 : index
    %8 = vector.load %arg4[%c0_3, %c0_4] : memref<4x128xf32, #tpu.memory_space<vmem>>, vector<1x128xf32>
    %9 = vector.broadcast %7 : vector<1x128xf32> to vector<8x128xf32>
    %10 = arith.mulf %6, %9 : vector<8x128xf32>
    %11 = vector.broadcast %8 : vector<1x128xf32> to vector<8x128xf32>
    %12 = arith.subf %10, %11 : vector<8x128xf32>
    %c0_5 = arith.constant 0 : index
    %c0_6 = arith.constant 0 : index
    %13 = vector.load %arg1[%c0_5, %c0_6] : memref<16x64xbf16, #tpu.memory_space<vmem>>, vector<16x8xbf16>
    %14 = arith.extf %13 : vector<16x8xbf16> to vector<16x8xf32>
    %cst_7 = arith.constant dense<0.000000e+00> : vector<16x128xf32>
    %15 = tpu.matmul %14, %12, %cst_7 {dimension_numbers = #tpu.dot_dimension_numbers<[1], [0], [0], [1], [0, 0, 1, 1], [], []>} : vector<16x8xf32>, vector<8x128xf32>, vector<16x128xf32> -> vector<16x128xf32>
    %16 = arith.addf %0, %15 : vector<16x128xf32>
    %c4_i32 = arith.constant 4 : i32
    %17 = vector.broadcast %c4_i32 : i32 to vector<8x128xi32>
    %18 = arith.shrsi %1, %17 : vector<8x128xi32>
    %c15_i32_8 = arith.constant 15 : i32
    %19 = vector.broadcast %c15_i32_8 : i32 to vector<8x128xi32>
    %20 = arith.andi %18, %19 : vector<8x128xi32>
    %21 = arith.sitofp %20 : vector<8x128xi32> to vector<8x128xf32>
    %c0_9 = arith.constant 0 : index
    %c0_10 = arith.constant 0 : index
    %22 = vector.load %arg3[%c0_9, %c0_10] : memref<4x128xf32, #tpu.memory_space<vmem>>, vector<1x128xf32>
    %c0_11 = arith.constant 0 : index
    %c0_12 = arith.constant 0 : index
    %23 = vector.load %arg4[%c0_11, %c0_12] : memref<4x128xf32, #tpu.memory_space<vmem>>, vector<1x128xf32>
    %24 = vector.broadcast %22 : vector<1x128xf32> to vector<8x128xf32>
    %25 = arith.mulf %21, %24 : vector<8x128xf32>
    %26 = vector.broadcast %23 : vector<1x128xf32> to vector<8x128xf32>
    %27 = arith.subf %25, %26 : vector<8x128xf32>
    %c0_13 = arith.constant 0 : index
    %c8 = arith.constant 8 : index
    %28 = vector.load %arg1[%c0_13, %c8] : memref<16x64xbf16, #tpu.memory_space<vmem>>, vector<16x8xbf16>
    %29 = arith.extf %28 : vector<16x8xbf16> to vector<16x8xf32>
    %cst_14 = arith.constant dense<0.000000e+00> : vector<16x128xf32>
    %30 = tpu.matmul %29, %27, %cst_14 {dimension_numbers = #tpu.dot_dimension_numbers<[1], [0], [0], [1], [0, 0, 1, 1], [], []>} : vector<16x8xf32>, vector<8x128xf32>, vector<16x128xf32> -> vector<16x128xf32>
    %31 = arith.addf %16, %30 : vector<16x128xf32>
    %c8_i32 = arith.constant 8 : i32
    %32 = vector.broadcast %c8_i32 : i32 to vector<8x128xi32>
    %33 = arith.shrsi %1, %32 : vector<8x128xi32>
    %c15_i32_15 = arith.constant 15 : i32
    %34 = vector.broadcast %c15_i32_15 : i32 to vector<8x128xi32>
    %35 = arith.andi %33, %34 : vector<8x128xi32>
    %36 = arith.sitofp %35 : vector<8x128xi32> to vector<8x128xf32>
    %c1 = arith.constant 1 : index
    %c0_16 = arith.constant 0 : index
    %37 = vector.load %arg3[%c1, %c0_16] : memref<4x128xf32, #tpu.memory_space<vmem>>, vector<1x128xf32>
    %c1_17 = arith.constant 1 : index
    %c0_18 = arith.constant 0 : index
    %38 = vector.load %arg4[%c1_17, %c0_18] : memref<4x128xf32, #tpu.memory_space<vmem>>, vector<1x128xf32>
    %39 = vector.broadcast %37 : vector<1x128xf32> to vector<8x128xf32>
    %40 = arith.mulf %36, %39 : vector<8x128xf32>
    %41 = vector.broadcast %38 : vector<1x128xf32> to vector<8x128xf32>
    %42 = arith.subf %40, %41 : vector<8x128xf32>
    %c0_19 = arith.constant 0 : index
    %c16 = arith.constant 16 : index
    %43 = vector.load %arg1[%c0_19, %c16] : memref<16x64xbf16, #tpu.memory_space<vmem>>, vector<16x8xbf16>
    %44 = arith.extf %43 : vector<16x8xbf16> to vector<16x8xf32>
    %cst_20 = arith.constant dense<0.000000e+00> : vector<16x128xf32>
    %45 = tpu.matmul %44, %42, %cst_20 {dimension_numbers = #tpu.dot_dimension_numbers<[1], [0], [0], [1], [0, 0, 1, 1], [], []>} : vector<16x8xf32>, vector<8x128xf32>, vector<16x128xf32> -> vector<16x128xf32>
    %46 = arith.addf %31, %45 : vector<16x128xf32>
    %c12_i32 = arith.constant 12 : i32
    %47 = vector.broadcast %c12_i32 : i32 to vector<8x128xi32>
    %48 = arith.shrsi %1, %47 : vector<8x128xi32>
    %c15_i32_21 = arith.constant 15 : i32
    %49 = vector.broadcast %c15_i32_21 : i32 to vector<8x128xi32>
    %50 = arith.andi %48, %49 : vector<8x128xi32>
    %51 = arith.sitofp %50 : vector<8x128xi32> to vector<8x128xf32>
    %c1_22 = arith.constant 1 : index
    %c0_23 = arith.constant 0 : index
    %52 = vector.load %arg3[%c1_22, %c0_23] : memref<4x128xf32, #tpu.memory_space<vmem>>, vector<1x128xf32>
    %c1_24 = arith.constant 1 : index
    %c0_25 = arith.constant 0 : index
    %53 = vector.load %arg4[%c1_24, %c0_25] : memref<4x128xf32, #tpu.memory_space<vmem>>, vector<1x128xf32>
    %54 = vector.broadcast %52 : vector<1x128xf32> to vector<8x128xf32>
    %55 = arith.mulf %51, %54 : vector<8x128xf32>
    %56 = vector.broadcast %53 : vector<1x128xf32> to vector<8x128xf32>
    %57 = arith.subf %55, %56 : vector<8x128xf32>
    %c0_26 = arith.constant 0 : index
    %c24 = arith.constant 24 : index
    %58 = vector.load %arg1[%c0_26, %c24] : memref<16x64xbf16, #tpu.memory_space<vmem>>, vector<16x8xbf16>
    %59 = arith.extf %58 : vector<16x8xbf16> to vector<16x8xf32>
    %cst_27 = arith.constant dense<0.000000e+00> : vector<16x128xf32>
    %60 = tpu.matmul %59, %57, %cst_27 {dimension_numbers = #tpu.dot_dimension_numbers<[1], [0], [0], [1], [0, 0, 1, 1], [], []>} : vector<16x8xf32>, vector<8x128xf32>, vector<16x128xf32> -> vector<16x128xf32>
    %61 = arith.addf %46, %60 : vector<16x128xf32>
    %c16_i32 = arith.constant 16 : i32
    %62 = vector.broadcast %c16_i32 : i32 to vector<8x128xi32>
    %63 = arith.shrsi %1, %62 : vector<8x128xi32>
    %c15_i32_28 = arith.constant 15 : i32
    %64 = vector.broadcast %c15_i32_28 : i32 to vector<8x128xi32>
    %65 = arith.andi %63, %64 : vector<8x128xi32>
    %66 = arith.sitofp %65 : vector<8x128xi32> to vector<8x128xf32>
    %c2 = arith.constant 2 : index
    %c0_29 = arith.constant 0 : index
    %67 = vector.load %arg3[%c2, %c0_29] : memref<4x128xf32, #tpu.memory_space<vmem>>, vector<1x128xf32>
    %c2_30 = arith.constant 2 : index
    %c0_31 = arith.constant 0 : index
    %68 = vector.load %arg4[%c2_30, %c0_31] : memref<4x128xf32, #tpu.memory_space<vmem>>, vector<1x128xf32>
    %69 = vector.broadcast %67 : vector<1x128xf32> to vector<8x128xf32>
    %70 = arith.mulf %66, %69 : vector<8x128xf32>
    %71 = vector.broadcast %68 : vector<1x128xf32> to vector<8x128xf32>
    %72 = arith.subf %70, %71 : vector<8x128xf32>
    %c0_32 = arith.constant 0 : index
    %c32 = arith.constant 32 : index
    %73 = vector.load %arg1[%c0_32, %c32] : memref<16x64xbf16, #tpu.memory_space<vmem>>, vector<16x8xbf16>
    %74 = arith.extf %73 : vector<16x8xbf16> to vector<16x8xf32>
    %cst_33 = arith.constant dense<0.000000e+00> : vector<16x128xf32>
    %75 = tpu.matmul %74, %72, %cst_33 {dimension_numbers = #tpu.dot_dimension_numbers<[1], [0], [0], [1], [0, 0, 1, 1], [], []>} : vector<16x8xf32>, vector<8x128xf32>, vector<16x128xf32> -> vector<16x128xf32>
    %76 = arith.addf %61, %75 : vector<16x128xf32>
    %c20_i32 = arith.constant 20 : i32
    %77 = vector.broadcast %c20_i32 : i32 to vector<8x128xi32>
    %78 = arith.shrsi %1, %77 : vector<8x128xi32>
    %c15_i32_34 = arith.constant 15 : i32
    %79 = vector.broadcast %c15_i32_34 : i32 to vector<8x128xi32>
    %80 = arith.andi %78, %79 : vector<8x128xi32>
    %81 = arith.sitofp %80 : vector<8x128xi32> to vector<8x128xf32>
    %c2_35 = arith.constant 2 : index
    %c0_36 = arith.constant 0 : index
    %82 = vector.load %arg3[%c2_35, %c0_36] : memref<4x128xf32, #tpu.memory_space<vmem>>, vector<1x128xf32>
    %c2_37 = arith.constant 2 : index
    %c0_38 = arith.constant 0 : index
    %83 = vector.load %arg4[%c2_37, %c0_38] : memref<4x128xf32, #tpu.memory_space<vmem>>, vector<1x128xf32>
    %84 = vector.broadcast %82 : vector<1x128xf32> to vector<8x128xf32>
    %85 = arith.mulf %81, %84 : vector<8x128xf32>
    %86 = vector.broadcast %83 : vector<1x128xf32> to vector<8x128xf32>
    %87 = arith.subf %85, %86 : vector<8x128xf32>
    %c0_39 = arith.constant 0 : index
    %c40 = arith.constant 40 : index
    %88 = vector.load %arg1[%c0_39, %c40] : memref<16x64xbf16, #tpu.memory_space<vmem>>, vector<16x8xbf16>
    %89 = arith.extf %88 : vector<16x8xbf16> to vector<16x8xf32>
    %cst_40 = arith.constant dense<0.000000e+00> : vector<16x128xf32>
    %90 = tpu.matmul %89, %87, %cst_40 {dimension_numbers = #tpu.dot_dimension_numbers<[1], [0], [0], [1], [0, 0, 1, 1], [], []>} : vector<16x8xf32>, vector<8x128xf32>, vector<16x128xf32> -> vector<16x128xf32>
    %91 = arith.addf %76, %90 : vector<16x128xf32>
    %c24_i32 = arith.constant 24 : i32
    %92 = vector.broadcast %c24_i32 : i32 to vector<8x128xi32>
    %93 = arith.shrsi %1, %92 : vector<8x128xi32>
    %c15_i32_41 = arith.constant 15 : i32
    %94 = vector.broadcast %c15_i32_41 : i32 to vector<8x128xi32>
    %95 = arith.andi %93, %94 : vector<8x128xi32>
    %96 = arith.sitofp %95 : vector<8x128xi32> to vector<8x128xf32>
    %c3 = arith.constant 3 : index
    %c0_42 = arith.constant 0 : index
    %97 = vector.load %arg3[%c3, %c0_42] : memref<4x128xf32, #tpu.memory_space<vmem>>, vector<1x128xf32>
    %c3_43 = arith.constant 3 : index
    %c0_44 = arith.constant 0 : index
    %98 = vector.load %arg4[%c3_43, %c0_44] : memref<4x128xf32, #tpu.memory_space<vmem>>, vector<1x128xf32>
    %99 = vector.broadcast %97 : vector<1x128xf32> to vector<8x128xf32>
    %100 = arith.mulf %96, %99 : vector<8x128xf32>
    %101 = vector.broadcast %98 : vector<1x128xf32> to vector<8x128xf32>
    %102 = arith.subf %100, %101 : vector<8x128xf32>
    %c0_45 = arith.constant 0 : index
    %c48 = arith.constant 48 : index
    %103 = vector.load %arg1[%c0_45, %c48] : memref<16x64xbf16, #tpu.memory_space<vmem>>, vector<16x8xbf16>
    %104 = arith.extf %103 : vector<16x8xbf16> to vector<16x8xf32>
    %cst_46 = arith.constant dense<0.000000e+00> : vector<16x128xf32>
    %105 = tpu.matmul %104, %102, %cst_46 {dimension_numbers = #tpu.dot_dimension_numbers<[1], [0], [0], [1], [0, 0, 1, 1], [], []>} : vector<16x8xf32>, vector<8x128xf32>, vector<16x128xf32> -> vector<16x128xf32>
    %106 = arith.addf %91, %105 : vector<16x128xf32>
    %c28_i32 = arith.constant 28 : i32
    %107 = vector.broadcast %c28_i32 : i32 to vector<8x128xi32>
    %108 = arith.shrsi %1, %107 : vector<8x128xi32>
    %c15_i32_47 = arith.constant 15 : i32
    %109 = vector.broadcast %c15_i32_47 : i32 to vector<8x128xi32>
    %110 = arith.andi %108, %109 : vector<8x128xi32>
    %111 = arith.sitofp %110 : vector<8x128xi32> to vector<8x128xf32>
    %c3_48 = arith.constant 3 : index
    %c0_49 = arith.constant 0 : index
    %112 = vector.load %arg3[%c3_48, %c0_49] : memref<4x128xf32, #tpu.memory_space<vmem>>, vector<1x128xf32>
    %c3_50 = arith.constant 3 : index
    %c0_51 = arith.constant 0 : index
    %113 = vector.load %arg4[%c3_50, %c0_51] : memref<4x128xf32, #tpu.memory_space<vmem>>, vector<1x128xf32>
    %114 = vector.broadcast %112 : vector<1x128xf32> to vector<8x128xf32>
    %115 = arith.mulf %111, %114 : vector<8x128xf32>
    %116 = vector.broadcast %113 : vector<1x128xf32> to vector<8x128xf32>
    %117 = arith.subf %115, %116 : vector<8x128xf32>
    %c0_52 = arith.constant 0 : index
    %c56 = arith.constant 56 : index
    %118 = vector.load %arg1[%c0_52, %c56] : memref<16x64xbf16, #tpu.memory_space<vmem>>, vector<16x8xbf16>
    %119 = arith.extf %118 : vector<16x8xbf16> to vector<16x8xf32>
    %cst_53 = arith.constant dense<0.000000e+00> : vector<16x128xf32>
    %120 = tpu.matmul %119, %117, %cst_53 {dimension_numbers = #tpu.dot_dimension_numbers<[1], [0], [0], [1], [0, 0, 1, 1], [], []>} : vector<16x8xf32>, vector<8x128xf32>, vector<16x128xf32> -> vector<16x128xf32>
    %121 = arith.addf %106, %120 : vector<16x128xf32>
    %c0_54 = arith.constant 0 : index
    %c0_55 = arith.constant 0 : index
    %122 = vector.load %arg5[%c0_54, %c0_55] : memref<1x128xf32, #tpu.memory_space<vmem>>, vector<1x128xf32>
    %123 = vector.broadcast %122 : vector<1x128xf32> to vector<16x128xf32>
    %124 = arith.addf %121, %123 : vector<16x128xf32>
    %c0_56 = arith.constant 0 : index
    %c0_57 = arith.constant 0 : index
    %125 = vector.load %arg6[%c0_56, %c0_57] : memref<16x128xf32, #tpu.memory_space<vmem>>, vector<16x128xf32>
    tpu.vector_store %arg6[%c0_56, %c0_57], %124 {strides = array<i32>} : memref<16x128xf32, #tpu.memory_space<vmem>>, vector<16x128xf32>,
    return
  }
  func.func @transform_0(%arg0: i32) -> (i32, i32) {
    %c0_i32 = arith.constant 0 : i32
    %c0_i32_0 = arith.constant 0 : i32
    %c0_i32_1 = arith.constant 0 : i32
    return %c0_i32, %c0_i32_0 : i32, i32
  }
  func.func @transform_1(%arg0: i32) -> (i32, i32) {
    %c0_i32 = arith.constant 0 : i32
    %c0_i32_0 = arith.constant 0 : i32
    return %c0_i32, %arg0 : i32, i32
  }
  func.func @transform_2(%arg0: i32) -> (i32, i32) {
    %c0_i32 = arith.constant 0 : i32
    %c0_i32_0 = arith.constant 0 : i32
    return %c0_i32, %arg0 : i32, i32
  }
  func.func @transform_3(%arg0: i32) -> (i32, i32) {
    %c0_i32 = arith.constant 0 : i32
    %c0_i32_0 = arith.constant 0 : i32
    return %c0_i32, %arg0 : i32, i32
  }
  func.func @transform_4(%arg0: i32) -> (i32, i32) {
    %c0_i32 = arith.constant 0 : i32
    %c0_i32_0 = arith.constant 0 : i32
    return %c0_i32, %arg0 : i32, i32
  }
  func.func @transform_5(%arg0: i32) -> (i32, i32) {
    %c0_i32 = arith.constant 0 : i32
    %c0_i32_0 = arith.constant 0 : i32
    return %c0_i32, %arg0 : i32, i32
  }
}

</mosaic_0001>

<llo_original>
// kernel: tpu_custom_call.1
$region0: #{tpu_custom_call.1}
  #allocation0 [shape = 'u32[]', space=smem, size = 0x4, offset = 0x4, fixed_abs, tag = 'smem constant byte address 0x4 - core index']
  #allocation1 [shape = 'u32[144,128]{1,0:T(1,128)}', space=vmem, size = 0x12000, scoped, tag = 'internal scratch']
  %s0 = inlined_call_operand.hbm [shape: bf16[16,64], index: 0, kind: input, shape index: {}]
  %s1 = inlined_call_operand.hbm [shape: s32[8,128], index: 1, kind: input, shape index: {}]
  %s2 = inlined_call_operand.hbm [shape: f32[4,128], index: 2, kind: input, shape index: {}]
  %s3 = inlined_call_operand.vmem [shape: f32[4,128], index: 3, kind: input, shape index: {}]
  %s4 = inlined_call_operand.vmem [shape: f32[1,128], index: 4, kind: input, shape index: {}]
  %s5 = inlined_call_operand.hbm [shape: f32[16,128], index: 5, kind: output, shape index: {}]
  %s6 = sld [smem:[#allocation0]]
  $region42: #{tpu_custom_call.1} parent=0
    _
  %s8 = ssub.s32 1, %s6
  %s9 = scalar_select 0, %s8, %s6
  $region1: #{tpu_custom_call.1} parent=0
    #allocation2 [shape = 'u8[4096]{0}', space=vmem, size = 0x1000, scoped, tag = 'input window, operand 0, single buffered']
    #allocation3 [shape = 's32[1]{0}', space=sflag, size = 0x4, scoped, tag = 'scoped memory for tpu_custom_call.1']
    #allocation4 [shape = 's32[1]{0}', space=sflag, size = 0x4, scoped, tag = 'scoped memory for tpu_custom_call.1']
    #allocation5 [shape = 'u8[4096]{0}', space=vmem, size = 0x1000, scoped, tag = 'input window, operand 1, single buffered']
    #allocation6 [shape = 's32[1]{0}', space=sflag, size = 0x4, scoped, tag = 'scoped memory for tpu_custom_call.1']
    #allocation7 [shape = 'u8[2048]{0}', space=vmem, size = 0x800, scoped, tag = 'input window, operand 2, single buffered']
    #allocation8 [shape = 'u8[8192]{0}', space=vmem, size = 0x2000, scoped, tag = 'output window, operand 0, single buffered']
    %10 = vsyncpa [#allocation3], 0
    %11 = vsyncpa [#allocation6], 0
    %12 = vsyncpa [#allocation4], 0
    // Predicated region
    $region2: #{tpu_custom_call.1} parent=1 // pred_check
      _
    $region3: #{tpu_custom_call.1} parent=1 // pred_check_branch
      %14 = sbr.rel (0) target = $region5
    $region4: #{tpu_custom_call.1} parent=1 // pred_region
      %s16 = ssub.s32 128, 128
      %17 = vsyncadd [#allocation3], %s16
      %s18 = sshll.u32 [#allocation2], 4
      %s19 = int_to_ptr.vmem [resolvable:$true] %s18
      %24 = dma.hbm_to_vmem [thread:$0]  %s0, 128, %s19, [#allocation3], 64, 64, 4
    $region5: #{tpu_custom_call.1} parent=1 // pred_fallthru
      _
    // Predicated region
    $region6: #{tpu_custom_call.1} parent=1 // pred_check
      _
    $region7: #{tpu_custom_call.1} parent=1 // pred_check_branch
      %26 = sbr.rel (0) target = $region9
    $region8: #{tpu_custom_call.1} parent=1 // pred_region
      %s28 = ssub.s32 128, 128
      %29 = vsyncadd [#allocation6], %s28
      %s31 = sshll.u32 [#allocation5], 4
      %s32 = int_to_ptr.vmem [resolvable:$true] %s31
      %34 = dma.hbm_to_vmem [thread:$0]  %s1, 128, %s32, [#allocation6]
    $region9: #{tpu_custom_call.1} parent=1 // pred_fallthru
      _
    // Predicated region
    $region10: #{tpu_custom_call.1} parent=1 // pred_check
      _
    $region11: #{tpu_custom_call.1} parent=1 // pred_check_branch
      %36 = sbr.rel (0) target = $region13
    $region12: #{tpu_custom_call.1} parent=1 // pred_region
      %s38 = ssub.s32 64, 64
      %39 = vsyncadd [#allocation6], %s38
      %s41 = sshll.u32 [#allocation7], 4
      %s42 = int_to_ptr.vmem [resolvable:$true] %s41
      %44 = dma.hbm_to_vmem [thread:$0]  %s2, 64, %s42, [#allocation6]
    $region13: #{tpu_custom_call.1} parent=1 // pred_fallthru
      _
    // Predicated region
    $region14: #{tpu_custom_call.1} parent=1 // pred_check
      _
    $region15: #{tpu_custom_call.1} parent=1 // pred_check_branch
      %46 = sbr.rel (0) target = $region17
    $region16: #{tpu_custom_call.1} parent=1 // pred_region
      _
    $region17: #{tpu_custom_call.1} parent=1 // pred_fallthru
      _
    // Predicated region
    $region18: #{tpu_custom_call.1} parent=1 // pred_check
      _
    $region19: #{tpu_custom_call.1} parent=1 // pred_check_branch
      %48 = sbr.rel (0) target = $region21
    $region20: #{tpu_custom_call.1} parent=1 // pred_region
      _
    $region21: #{tpu_custom_call.1} parent=1 // pred_fallthru
      _
    // Predicated region
    $region22: #{tpu_custom_call.1} parent=1 // pred_check
      _
    $region23: #{tpu_custom_call.1} parent=1 // pred_check_branch
      %50 = sbr.rel (0) target = $region25
    $region24: #{tpu_custom_call.1} parent=1 // pred_region
      %51 = dma.done [#allocation3], 128
    $region25: #{tpu_custom_call.1} parent=1 // pred_fallthru
      _
    // Predicated region
    $region26: #{tpu_custom_call.1} parent=1 // pred_check
      _
    $region27: #{tpu_custom_call.1} parent=1 // pred_check_branch
      %53 = sbr.rel (0) target = $region29
    $region28: #{tpu_custom_call.1} parent=1 // pred_region
      %54 = dma.done [#allocation6], 128
    $region29: #{tpu_custom_call.1} parent=1 // pred_fallthru
      _
    // Predicated region
    $region30: #{tpu_custom_call.1} parent=1 // pred_check
      _
    $region31: #{tpu_custom_call.1} parent=1 // pred_check_branch
      %56 = sbr.rel (0) target = $region33
    $region32: #{tpu_custom_call.1} parent=1 // pred_region
      %57 = dma.done [#allocation6], 64
    $region33: #{tpu_custom_call.1} parent=1 // pred_fallthru
      _
    %v58 = vld [vmem:[#allocation5] sm:$0xff]
    %v59 = vand.u32 %v58, 15
    %v60 = vcvt.s32.f32 %v59
    %v61 = vld [vmem:[#allocation7] sm:$0x1]
    %v62 = vld [vmem:[%s3] sm:$0x1]
    %v63 = vlaneseq
    %v64 = vshrl.u32 %v63, 7
    %v65 = vsub.s32 0, %v64
    %v66 = vrot.slane %v61, %v65
    %v67 = vmul.f32 %v60, %v66
    %v68 = vlaneseq
    %v69 = vshrl.u32 %v68, 7
    %v70 = vsub.s32 0, %v69
    %v71 = vrot.slane %v62, %v70
    %v72 = vsub.f32 %v67, %v71
    %v73 = vld [vmem:[#allocation2] sm:$0xf]
    %v74 = vld [vmem:[#allocation2 + $0x4] sm:$0xf]
    %v75 = vunpack.c.l.bf16 %v73
    %v76 = vunpack.c.l.bf16 %v74
    %v77 = vshra.s32 %v58, 4
    %v78 = vand.u32 %v77, 15
    %v79 = vcvt.s32.f32 %v78
    %v80 = vmul.f32 %v79, %v66
    %v81 = vsub.f32 %v80, %v71
    %84 = vrot.lane.b32.xlu0 %v75, 120
    %v85 = vpop.permute.xlu0 %84
    %86 = vrot.lane.b32.xlu0 %v76, 120
    %v87 = vpop.permute.xlu0 %86
    %vm88 = vcmask 64512
    %v89 = vsel %vm88, %v85, 0
    %v91 = vsel %vm88, %v87, 0
    %93 = vmatprep.subr.mxu0 0.0
    %94 = vmatpush1.msra.mxu0 0.0
    %95 = vmatprep.subr.mxu0 0.0
    %96 = vmatpush1.msra.mxu0 0.0
    %97 = vmatprep.subr.mxu0 0.0
    %98 = vmatpush1.msra.mxu0 0.0
    %99 = vmatprep.subr.mxu0 0.0
    %100 = vmatpush1.msra.mxu0 0.0
    %101 = vmatprep.subr.mxu0 0.0
    %102 = vmatpush1.msra.mxu0 0.0
    %103 = vmatprep.subr.mxu0 0.0
    %104 = vmatpush1.msra.mxu0 0.0
    %105 = vmatprep.subr.mxu0 0.0
    %106 = vmatpush1.msra.mxu0 0.0
    %107 = vmatprep.subr.mxu0 0.0
    %108 = vmatpush1.msra.mxu0 0.0
    %109 = vmatprep.subr.mxu0 0.0
    %110 = vmatpush1.msra.mxu0 0.0
    %111 = vmatprep.subr.mxu0 0.0
    %112 = vmatpush1.msra.mxu0 0.0
    %113 = vmatprep.subr.mxu0 0.0
    %114 = vmatpush1.msra.mxu0 0.0
    %115 = vmatprep.subr.mxu0 0.0
    %116 = vmatpush1.msra.mxu0 0.0
    %117 = vmatprep.subr.mxu0 0.0
    %118 = vmatpush1.msra.mxu0 0.0
    %119 = vmatprep.subr.mxu0 0.0
    %120 = vmatpush1.msra.mxu0 0.0
    %121 = vmatprep.subr.mxu0 0.0
    %122 = vmatpush1.msra.mxu0 0.0
    %123 = vmatprep.subr.mxu0 0.0
    %124 = vmatpush1.msra.mxu0 %v81
    %125 = vmatprep.subr.mxu0 0.0
    %126 = vmatpush2.msra.mxu0 0.0
    %127 = vmatprep.subr.mxu0 0.0
    %128 = vmatpush2.msra.mxu0 0.0
    %129 = vmatprep.subr.mxu0 0.0
    %130 = vmatpush2.msra.mxu0 0.0
    %131 = vmatprep.subr.mxu0 0.0
    %132 = vmatpush2.msra.mxu0 0.0
    %133 = vmatprep.subr.mxu0 0.0
    %134 = vmatpush2.msra.mxu0 0.0
    %135 = vmatprep.subr.mxu0 0.0
    %136 = vmatpush2.msra.mxu0 0.0
    %137 = vmatprep.subr.mxu0 0.0
    %138 = vmatpush2.msra.mxu0 0.0
    %139 = vmatprep.subr.mxu0 0.0
    %140 = vmatpush2.msra.mxu0 0.0
    %141 = vmatprep.subr.mxu0 0.0
    %142 = vmatpush2.msra.mxu0 0.0
    %143 = vmatprep.subr.mxu0 0.0
    %144 = vmatpush2.msra.mxu0 0.0
    %145 = vmatprep.subr.mxu0 0.0
    %146 = vmatpush2.msra.mxu0 0.0
    %147 = vmatprep.subr.mxu0 0.0
    %148 = vmatpush2.msra.mxu0 0.0
    %149 = vmatprep.subr.mxu0 0.0
    %150 = vmatpush2.msra.mxu0 0.0
    %151 = vmatprep.subr.mxu0 0.0
    %152 = vmatpush2.msra.mxu0 0.0
    %153 = vmatprep.subr.mxu0 0.0
    %154 = vmatpush2.msra.mxu0 0.0
    %155 = vmatprep.subr.mxu0 0.0
    %156 = vmatpush2.msra.mxu0 0.0
    %157 = vmatprep.mubr.f32.mxu0 0.0
    %158 = vmatmul.mubr.f32.gmra.mxu0 %v89
    %v159 = vpop.f32.mrf.mxu0
    %v160 = vadd.f32 0.0, %v159
    %v161 = vpop.f32.mrf.mxu0
    %162 = vmatprep.mubr.f32.mxu0 0.0
    %163 = vmatmul.mubr.f32.gmra.mxu0 %v91
    %v164 = vpop.f32.mrf.mxu0
    %v165 = vadd.f32 0.0, %v164
    %v166 = vpop.f32.mrf.mxu0
    %167 = vdwg.mxu0
    %v168 = vsel %vm88, %v75, 0
    %v170 = vsel %vm88, %v76, 0
    %172 = vmatprep.subr.mxu0 0.0
    %173 = vmatpush1.msra.mxu0 0.0
    %174 = vmatprep.subr.mxu0 0.0
    %175 = vmatpush1.msra.mxu0 0.0
    %176 = vmatprep.subr.mxu0 0.0
    %177 = vmatpush1.msra.mxu0 0.0
    %178 = vmatprep.subr.mxu0 0.0
    %179 = vmatpush1.msra.mxu0 0.0
    %180 = vmatprep.subr.mxu0 0.0
    %181 = vmatpush1.msra.mxu0 0.0
    %182 = vmatprep.subr.mxu0 0.0
    %183 = vmatpush1.msra.mxu0 0.0
    %184 = vmatprep.subr.mxu0 0.0
    %185 = vmatpush1.msra.mxu0 0.0
    %186 = vmatprep.subr.mxu0 0.0
    %187 = vmatpush1.msra.mxu0 0.0
    %188 = vmatprep.subr.mxu0 0.0
    %189 = vmatpush1.msra.mxu0 0.0
    %190 = vmatprep.subr.mxu0 0.0
    %191 = vmatpush1.msra.mxu0 0.0
    %192 = vmatprep.subr.mxu0 0.0
    %193 = vmatpush1.msra.mxu0 0.0
    %194 = vmatprep.subr.mxu0 0.0
    %195 = vmatpush1.msra.mxu0 0.0
    %196 = vmatprep.subr.mxu0 0.0
    %197 = vmatpush1.msra.mxu0 0.0
    %198 = vmatprep.subr.mxu0 0.0
    %199 = vmatpush1.msra.mxu0 0.0
    %200 = vmatprep.subr.mxu0 0.0
    %201 = vmatpush1.msra.mxu0 0.0
    %202 = vmatprep.subr.mxu0 0.0
    %203 = vmatpush1.msra.mxu0 %v72
    %204 = vmatprep.subr.mxu0 0.0
    %205 = vmatpush2.msra.mxu0 0.0
    %206 = vmatprep.subr.mxu0 0.0
    %207 = vmatpush2.msra.mxu0 0.0
    %208 = vmatprep.subr.mxu0 0.0
    %209 = vmatpush2.msra.mxu0 0.0
    %210 = vmatprep.subr.mxu0 0.0
    %211 = vmatpush2.msra.mxu0 0.0
    %212 = vmatprep.subr.mxu0 0.0
    %213 = vmatpush2.msra.mxu0 0.0
    %214 = vmatprep.subr.mxu0 0.0
    %215 = vmatpush2.msra.mxu0 0.0
    %216 = vmatprep.subr.mxu0 0.0
    %217 = vmatpush2.msra.mxu0 0.0
    %218 = vmatprep.subr.mxu0 0.0
    %219 = vmatpush2.msra.mxu0 0.0
    %220 = vmatprep.subr.mxu0 0.0
    %221 = vmatpush2.msra.mxu0 0.0
    %222 = vmatprep.subr.mxu0 0.0
    %223 = vmatpush2.msra.mxu0 0.0
    %224 = vmatprep.subr.mxu0 0.0
    %225 = vmatpush2.msra.mxu0 0.0
    %226 = vmatprep.subr.mxu0 0.0
    %227 = vmatpush2.msra.mxu0 0.0
    %228 = vmatprep.subr.mxu0 0.0
    %229 = vmatpush2.msra.mxu0 0.0
    %230 = vmatprep.subr.mxu0 0.0
    %231 = vmatpush2.msra.mxu0 0.0
    %232 = vmatprep.subr.mxu0 0.0
    %233 = vmatpush2.msra.mxu0 0.0
    %234 = vmatprep.subr.mxu0 0.0
    %235 = vmatpush2.msra.mxu0 0.0
    %236 = vmatprep.mubr.f32.mxu0 0.0
    %237 = vmatmul.mubr.f32.gmra.mxu0 %v168
    %v238 = vpop.f32.mrf.mxu0
    %v239 = vadd.f32 %v160, %v238
    %v240 = vpop.f32.mrf.mxu0
    %241 = vmatprep.mubr.f32.mxu0 0.0
    %242 = vmatmul.mubr.f32.gmra.mxu0 %v170
    %v243 = vpop.f32.mrf.mxu0
    %v244 = vadd.f32 %v165, %v243
    %v245 = vpop.f32.mrf.mxu0
    %246 = vdwg.mxu0
    %v247 = vshra.s32 %v58, 8
    %v248 = vand.u32 %v247, 15
    %v249 = vcvt.s32.f32 %v248
    %v250 = vld [vmem:[#allocation7 + $0x1] sm:$0x1]
    %v251 = vld [vmem:[%s3 + $0x1] sm:$0x1]
    %v252 = vlaneseq
    %v253 = vshrl.u32 %v252, 7
    %v254 = vsub.s32 0, %v253
    %v255 = vrot.slane %v250, %v254
    %v256 = vmul.f32 %v249, %v255
    %v257 = vlaneseq
    %v258 = vshrl.u32 %v257, 7
    %v259 = vsub.s32 0, %v258
    %v260 = vrot.slane %v251, %v259
    %v261 = vsub.f32 %v256, %v260
    %262 = vrot.lane.b32.xlu0 %v75, 112
    %v263 = vpop.permute.xlu0 %262
    %264 = vrot.lane.b32.xlu0 %v76, 112
    %v265 = vpop.permute.xlu0 %264
    %v266 = vsel %vm88, %v263, 0
    %v268 = vsel %vm88, %v265, 0
    %270 = vmatprep.subr.mxu0 0.0
    %271 = vmatpush1.msra.mxu0 0.0
    %272 = vmatprep.subr.mxu0 0.0
    %273 = vmatpush1.msra.mxu0 0.0
    %274 = vmatprep.subr.mxu0 0.0
    %275 = vmatpush1.msra.mxu0 0.0
    %276 = vmatprep.subr.mxu0 0.0
    %277 = vmatpush1.msra.mxu0 0.0
    %278 = vmatprep.subr.mxu0 0.0
    %279 = vmatpush1.msra.mxu0 0.0
    %280 = vmatprep.subr.mxu0 0.0
    %281 = vmatpush1.msra.mxu0 0.0
    %282 = vmatprep.subr.mxu0 0.0
    %283 = vmatpush1.msra.mxu0 0.0
    %284 = vmatprep.subr.mxu0 0.0
    %285 = vmatpush1.msra.mxu0 0.0
    %286 = vmatprep.subr.mxu0 0.0
    %287 = vmatpush1.msra.mxu0 0.0
    %288 = vmatprep.subr.mxu0 0.0
    %289 = vmatpush1.msra.mxu0 0.0
    %290 = vmatprep.subr.mxu0 0.0
    %291 = vmatpush1.msra.mxu0 0.0
    %292 = vmatprep.subr.mxu0 0.0
    %293 = vmatpush1.msra.mxu0 0.0
    %294 = vmatprep.subr.mxu0 0.0
    %295 = vmatpush1.msra.mxu0 0.0
    %296 = vmatprep.subr.mxu0 0.0
    %297 = vmatpush1.msra.mxu0 0.0
    %298 = vmatprep.subr.mxu0 0.0
    %299 = vmatpush1.msra.mxu0 0.0
    %300 = vmatprep.subr.mxu0 0.0
    %301 = vmatpush1.msra.mxu0 %v261
    %302 = vmatprep.subr.mxu0 0.0
    %303 = vmatpush2.msra.mxu0 0.0
    %304 = vmatprep.subr.mxu0 0.0
    %305 = vmatpush2.msra.mxu0 0.0
    %306 = vmatprep.subr.mxu0 0.0
    %307 = vmatpush2.msra.mxu0 0.0
    %308 = vmatprep.subr.mxu0 0.0
    %309 = vmatpush2.msra.mxu0 0.0
    %310 = vmatprep.subr.mxu0 0.0
    %311 = vmatpush2.msra.mxu0 0.0
    %312 = vmatprep.subr.mxu0 0.0
    %313 = vmatpush2.msra.mxu0 0.0
    %314 = vmatprep.subr.mxu0 0.0
    %315 = vmatpush2.msra.mxu0 0.0
    %316 = vmatprep.subr.mxu0 0.0
    %317 = vmatpush2.msra.mxu0 0.0
    %318 = vmatprep.subr.mxu0 0.0
    %319 = vmatpush2.msra.mxu0 0.0
    %320 = vmatprep.subr.mxu0 0.0
    %321 = vmatpush2.msra.mxu0 0.0
    %322 = vmatprep.subr.mxu0 0.0
    %323 = vmatpush2.msra.mxu0 0.0
    %324 = vmatprep.subr.mxu0 0.0
    %325 = vmatpush2.msra.mxu0 0.0
    %326 = vmatprep.subr.mxu0 0.0
    %327 = vmatpush2.msra.mxu0 0.0
    %328 = vmatprep.subr.mxu0 0.0
    %329 = vmatpush2.msra.mxu0 0.0
    %330 = vmatprep.subr.mxu0 0.0
    %331 = vmatpush2.msra.mxu0 0.0
    %332 = vmatprep.subr.mxu0 0.0
    %333 = vmatpush2.msra.mxu0 0.0
    %334 = vmatprep.mubr.f32.mxu0 0.0
    %335 = vmatmul.mubr.f32.gmra.mxu0 %v266
    %v336 = vpop.f32.mrf.mxu0
    %v337 = vadd.f32 0.0, %v336
    %v338 = vpop.f32.mrf.mxu0
    %339 = vmatprep.mubr.f32.mxu0 0.0
    %340 = vmatmul.mubr.f32.gmra.mxu0 %v268
    %v341 = vpop.f32.mrf.mxu0
    %v342 = vadd.f32 0.0, %v341
    %v343 = vpop.f32.mrf.mxu0
    %344 = vdwg.mxu0
    %v345 = vadd.f32 %v239, %v337
    %v346 = vadd.f32 %v244, %v342
    %v347 = vshra.s32 %v58, 12
    %v348 = vand.u32 %v347, 15
    %v349 = vcvt.s32.f32 %v348
    %v350 = vmul.f32 %v349, %v255
    %v351 = vsub.f32 %v350, %v260
    %352 = vrot.lane.b32.xlu0 %v75, 104
    %v353 = vpop.permute.xlu0 %352
    %354 = vrot.lane.b32.xlu0 %v76, 104
    %v355 = vpop.permute.xlu0 %354
    %v356 = vsel %vm88, %v353, 0
    %v358 = vsel %vm88, %v355, 0
    %360 = vmatprep.subr.mxu0 0.0
    %361 = vmatpush1.msra.mxu0 0.0
    %362 = vmatprep.subr.mxu0 0.0
    %363 = vmatpush1.msra.mxu0 0.0
    %364 = vmatprep.subr.mxu0 0.0
    %365 = vmatpush1.msra.mxu0 0.0
    %366 = vmatprep.subr.mxu0 0.0
    %367 = vmatpush1.msra.mxu0 0.0
    %368 = vmatprep.subr.mxu0 0.0
    %369 = vmatpush1.msra.mxu0 0.0
    %370 = vmatprep.subr.mxu0 0.0
    %371 = vmatpush1.msra.mxu0 0.0
    %372 = vmatprep.subr.mxu0 0.0
    %373 = vmatpush1.msra.mxu0 0.0
    %374 = vmatprep.subr.mxu0 0.0
    %375 = vmatpush1.msra.mxu0 0.0
    %376 = vmatprep.subr.mxu0 0.0
    %377 = vmatpush1.msra.mxu0 0.0
    %378 = vmatprep.subr.mxu0 0.0
    %379 = vmatpush1.msra.mxu0 0.0
    %380 = vmatprep.subr.mxu0 0.0
    %381 = vmatpush1.msra.mxu0 0.0
    %382 = vmatprep.subr.mxu0 0.0
    %383 = vmatpush1.msra.mxu0 0.0
    %384 = vmatprep.subr.mxu0 0.0
    %385 = vmatpush1.msra.mxu0 0.0
    %386 = vmatprep.subr.mxu0 0.0
    %387 = vmatpush1.msra.mxu0 0.0
    %388 = vmatprep.subr.mxu0 0.0
    %389 = vmatpush1.msra.mxu0 0.0
    %390 = vmatprep.subr.mxu0 0.0
    %391 = vmatpush1.msra.mxu0 %v351
    %392 = vmatprep.subr.mxu0 0.0
    %393 = vmatpush2.msra.mxu0 0.0
    %394 = vmatprep.subr.mxu0 0.0
    %395 = vmatpush2.msra.mxu0 0.0
    %396 = vmatprep.subr.mxu0 0.0
    %397 = vmatpush2.msra.mxu0 0.0
    %398 = vmatprep.subr.mxu0 0.0
    %399 = vmatpush2.msra.mxu0 0.0
    %400 = vmatprep.subr.mxu0 0.0
    %401 = vmatpush2.msra.mxu0 0.0
    %402 = vmatprep.subr.mxu0 0.0
    %403 = vmatpush2.msra.mxu0 0.0
    %404 = vmatprep.subr.mxu0 0.0
    %405 = vmatpush2.msra.mxu0 0.0
    %406 = vmatprep.subr.mxu0 0.0
    %407 = vmatpush2.msra.mxu0 0.0
    %408 = vmatprep.subr.mxu0 0.0
    %409 = vmatpush2.msra.mxu0 0.0
    %410 = vmatprep.subr.mxu0 0.0
    %411 = vmatpush2.msra.mxu0 0.0
    %412 = vmatprep.subr.mxu0 0.0
    %413 = vmatpush2.msra.mxu0 0.0
    %414 = vmatprep.subr.mxu0 0.0
    %415 = vmatpush2.msra.mxu0 0.0
    %416 = vmatprep.subr.mxu0 0.0
    %417 = vmatpush2.msra.mxu0 0.0
    %418 = vmatprep.subr.mxu0 0.0
    %419 = vmatpush2.msra.mxu0 0.0
    %420 = vmatprep.subr.mxu0 0.0
    %421 = vmatpush2.msra.mxu0 0.0
    %422 = vmatprep.subr.mxu0 0.0
    %423 = vmatpush2.msra.mxu0 0.0
    %424 = vmatprep.mubr.f32.mxu0 0.0
    %425 = vmatmul.mubr.f32.gmra.mxu0 %v356
    %v426 = vpop.f32.mrf.mxu0
    %v427 = vadd.f32 0.0, %v426
    %v428 = vpop.f32.mrf.mxu0
    %429 = vmatprep.mubr.f32.mxu0 0.0
    %430 = vmatmul.mubr.f32.gmra.mxu0 %v358
    %v431 = vpop.f32.mrf.mxu0
    %v432 = vadd.f32 0.0, %v431
    %v433 = vpop.f32.mrf.mxu0
    %434 = vdwg.mxu0
    %v435 = vadd.f32 %v345, %v427
    %v436 = vadd.f32 %v346, %v432
    %v437 = vshra.s32 %v58, 16
    %v438 = vand.u32 %v437, 15
    %v439 = vcvt.s32.f32 %v438
    %v440 = vld [vmem:[#allocation7 + $0x2] sm:$0x1]
    %v441 = vld [vmem:[%s3 + $0x2] sm:$0x1]
    %v442 = vlaneseq
    %v443 = vshrl.u32 %v442, 7
    %v444 = vsub.s32 0, %v443
    %v445 = vrot.slane %v440, %v444
    %v446 = vmul.f32 %v439, %v445
    %v447 = vlaneseq
    %v448 = vshrl.u32 %v447, 7
    %v449 = vsub.s32 0, %v448
    %v450 = vrot.slane %v441, %v449
    %v451 = vsub.f32 %v446, %v450
    %452 = vrot.lane.b32.xlu0 %v75, 96
    %v453 = vpop.permute.xlu0 %452
    %454 = vrot.lane.b32.xlu0 %v76, 96
    %v455 = vpop.permute.xlu0 %454
    %v456 = vsel %vm88, %v453, 0
    %v458 = vsel %vm88, %v455, 0
    %460 = vmatprep.subr.mxu0 0.0
    %461 = vmatpush1.msra.mxu0 0.0
    %462 = vmatprep.subr.mxu0 0.0
    %463 = vmatpush1.msra.mxu0 0.0
    %464 = vmatprep.subr.mxu0 0.0
    %465 = vmatpush1.msra.mxu0 0.0
    %466 = vmatprep.subr.mxu0 0.0
    %467 = vmatpush1.msra.mxu0 0.0
    %468 = vmatprep.subr.mxu0 0.0
    %469 = vmatpush1.msra.mxu0 0.0
    %470 = vmatprep.subr.mxu0 0.0
    %471 = vmatpush1.msra.mxu0 0.0
    %472 = vmatprep.subr.mxu0 0.0
    %473 = vmatpush1.msra.mxu0 0.0
    %474 = vmatprep.subr.mxu0 0.0
    %475 = vmatpush1.msra.mxu0 0.0
    %476 = vmatprep.subr.mxu0 0.0
    %477 = vmatpush1.msra.mxu0 0.0
    %478 = vmatprep.subr.mxu0 0.0
    %479 = vmatpush1.msra.mxu0 0.0
    %480 = vmatprep.subr.mxu0 0.0
    %481 = vmatpush1.msra.mxu0 0.0
    %482 = vmatprep.subr.mxu0 0.0
    %483 = vmatpush1.msra.mxu0 0.0
    %484 = vmatprep.subr.mxu0 0.0
    %485 = vmatpush1.msra.mxu0 0.0
    %486 = vmatprep.subr.mxu0 0.0
    %487 = vmatpush1.msra.mxu0 0.0
    %488 = vmatprep.subr.mxu0 0.0
    %489 = vmatpush1.msra.mxu0 0.0
    %490 = vmatprep.subr.mxu0 0.0
    %491 = vmatpush1.msra.mxu0 %v451
    %492 = vmatprep.subr.mxu0 0.0
    %493 = vmatpush2.msra.mxu0 0.0
    %494 = vmatprep.subr.mxu0 0.0
    %495 = vmatpush2.msra.mxu0 0.0
    %496 = vmatprep.subr.mxu0 0.0
    %497 = vmatpush2.msra.mxu0 0.0
    %498 = vmatprep.subr.mxu0 0.0
    %499 = vmatpush2.msra.mxu0 0.0
    %500 = vmatprep.subr.mxu0 0.0
    %501 = vmatpush2.msra.mxu0 0.0
    %502 = vmatprep.subr.mxu0 0.0
    %503 = vmatpush2.msra.mxu0 0.0
    %504 = vmatprep.subr.mxu0 0.0
    %505 = vmatpush2.msra.mxu0 0.0
    %506 = vmatprep.subr.mxu0 0.0
    %507 = vmatpush2.msra.mxu0 0.0
    %508 = vmatprep.subr.mxu0 0.0
    %509 = vmatpush2.msra.mxu0 0.0
    %510 = vmatprep.subr.mxu0 0.0
    %511 = vmatpush2.msra.mxu0 0.0
    %512 = vmatprep.subr.mxu0 0.0
    %513 = vmatpush2.msra.mxu0 0.0
    %514 = vmatprep.subr.mxu0 0.0
    %515 = vmatpush2.msra.mxu0 0.0
    %516 = vmatprep.subr.mxu0 0.0
    %517 = vmatpush2.msra.mxu0 0.0
    %518 = vmatprep.subr.mxu0 0.0
    %519 = vmatpush2.msra.mxu0 0.0
    %520 = vmatprep.subr.mxu0 0.0
    %521 = vmatpush2.msra.mxu0 0.0
    %522 = vmatprep.subr.mxu0 0.0
    %523 = vmatpush2.msra.mxu0 0.0
    %524 = vmatprep.mubr.f32.mxu0 0.0
    %525 = vmatmul.mubr.f32.gmra.mxu0 %v456
    %v526 = vpop.f32.mrf.mxu0
    %v527 = vadd.f32 0.0, %v526
    %v528 = vpop.f32.mrf.mxu0
    %529 = vmatprep.mubr.f32.mxu0 0.0
    %530 = vmatmul.mubr.f32.gmra.mxu0 %v458
    %v531 = vpop.f32.mrf.mxu0
    %v532 = vadd.f32 0.0, %v531
    %v533 = vpop.f32.mrf.mxu0
    %534 = vdwg.mxu0
    %v535 = vadd.f32 %v435, %v527
    %v536 = vadd.f32 %v436, %v532
    %v537 = vshra.s32 %v58, 20
    %v538 = vand.u32 %v537, 15
    %v539 = vcvt.s32.f32 %v538
    %v540 = vmul.f32 %v539, %v445
    %v541 = vsub.f32 %v540, %v450
    %542 = vrot.lane.b32.xlu0 %v75, 88
    %v543 = vpop.permute.xlu0 %542
    %544 = vrot.lane.b32.xlu0 %v76, 88
    %v545 = vpop.permute.xlu0 %544
    %v546 = vsel %vm88, %v543, 0
    %v548 = vsel %vm88, %v545, 0
    %550 = vmatprep.subr.mxu0 0.0
    %551 = vmatpush1.msra.mxu0 0.0
    %552 = vmatprep.subr.mxu0 0.0
    %553 = vmatpush1.msra.mxu0 0.0
    %554 = vmatprep.subr.mxu0 0.0
    %555 = vmatpush1.msra.mxu0 0.0
    %556 = vmatprep.subr.mxu0 0.0
    %557 = vmatpush1.msra.mxu0 0.0
    %558 = vmatprep.subr.mxu0 0.0
    %559 = vmatpush1.msra.mxu0 0.0
    %560 = vmatprep.subr.mxu0 0.0
    %561 = vmatpush1.msra.mxu0 0.0
    %562 = vmatprep.subr.mxu0 0.0
    %563 = vmatpush1.msra.mxu0 0.0
    %564 = vmatprep.subr.mxu0 0.0
    %565 = vmatpush1.msra.mxu0 0.0
    %566 = vmatprep.subr.mxu0 0.0
    %567 = vmatpush1.msra.mxu0 0.0
    %568 = vmatprep.subr.mxu0 0.0
    %569 = vmatpush1.msra.mxu0 0.0
    %570 = vmatprep.subr.mxu0 0.0
    %571 = vmatpush1.msra.mxu0 0.0
    %572 = vmatprep.subr.mxu0 0.0
    %573 = vmatpush1.msra.mxu0 0.0
    %574 = vmatprep.subr.mxu0 0.0
    %575 = vmatpush1.msra.mxu0 0.0
    %576 = vmatprep.subr.mxu0 0.0
    %577 = vmatpush1.msra.mxu0 0.0
    %578 = vmatprep.subr.mxu0 0.0
    %579 = vmatpush1.msra.mxu0 0.0
    %580 = vmatprep.subr.mxu0 0.0
    %581 = vmatpush1.msra.mxu0 %v541
    %582 = vmatprep.subr.mxu0 0.0
    %583 = vmatpush2.msra.mxu0 0.0
    %584 = vmatprep.subr.mxu0 0.0
    %585 = vmatpush2.msra.mxu0 0.0
    %586 = vmatprep.subr.mxu0 0.0
    %587 = vmatpush2.msra.mxu0 0.0
    %588 = vmatprep.subr.mxu0 0.0
    %589 = vmatpush2.msra.mxu0 0.0
    %590 = vmatprep.subr.mxu0 0.0
    %591 = vmatpush2.msra.mxu0 0.0
    %592 = vmatprep.subr.mxu0 0.0
    %593 = vmatpush2.msra.mxu0 0.0
    %594 = vmatprep.subr.mxu0 0.0
    %595 = vmatpush2.msra.mxu0 0.0
    %596 = vmatprep.subr.mxu0 0.0
    %597 = vmatpush2.msra.mxu0 0.0
    %598 = vmatprep.subr.mxu0 0.0
    %599 = vmatpush2.msra.mxu0 0.0
    %600 = vmatprep.subr.mxu0 0.0
    %601 = vmatpush2.msra.mxu0 0.0
    %602 = vmatprep.subr.mxu0 0.0
    %603 = vmatpush2.msra.mxu0 0.0
    %604 = vmatprep.subr.mxu0 0.0
    %605 = vmatpush2.msra.mxu0 0.0
    %606 = vmatprep.subr.mxu0 0.0
    %607 = vmatpush2.msra.mxu0 0.0
    %608 = vmatprep.subr.mxu0 0.0
    %609 = vmatpush2.msra.mxu0 0.0
    %610 = vmatprep.subr.mxu0 0.0
    %611 = vmatpush2.msra.mxu0 0.0
    %612 = vmatprep.subr.mxu0 0.0
    %613 = vmatpush2.msra.mxu0 0.0
    %614 = vmatprep.mubr.f32.mxu0 0.0
    %615 = vmatmul.mubr.f32.gmra.mxu0 %v546
    %v616 = vpop.f32.mrf.mxu0
    %v617 = vadd.f32 0.0, %v616
    %v618 = vpop.f32.mrf.mxu0
    %619 = vmatprep.mubr.f32.mxu0 0.0
    %620 = vmatmul.mubr.f32.gmra.mxu0 %v548
    %v621 = vpop.f32.mrf.mxu0
    %v622 = vadd.f32 0.0, %v621
    %v623 = vpop.f32.mrf.mxu0
    %624 = vdwg.mxu0
    %v625 = vadd.f32 %v535, %v617
    %v626 = vadd.f32 %v536, %v622
    %v627 = vshra.s32 %v58, 24
    %v628 = vand.u32 %v627, 15
    %v629 = vcvt.s32.f32 %v628
    %v630 = vld [vmem:[#allocation7 + $0x3] sm:$0x1]
    %v631 = vld [vmem:[%s3 + $0x3] sm:$0x1]
    %v632 = vlaneseq
    %v633 = vshrl.u32 %v632, 7
    %v634 = vsub.s32 0, %v633
    %v635 = vrot.slane %v630, %v634
    %v636 = vmul.f32 %v629, %v635
    %v637 = vlaneseq
    %v638 = vshrl.u32 %v637, 7
    %v639 = vsub.s32 0, %v638
    %v640 = vrot.slane %v631, %v639
    %v641 = vsub.f32 %v636, %v640
    %642 = vrot.lane.b32.xlu0 %v75, 80
    %v643 = vpop.permute.xlu0 %642
    %644 = vrot.lane.b32.xlu0 %v76, 80
    %v645 = vpop.permute.xlu0 %644
    %v646 = vsel %vm88, %v643, 0
    %v648 = vsel %vm88, %v645, 0
    %650 = vmatprep.subr.mxu0 0.0
    %651 = vmatpush1.msra.mxu0 0.0
    %652 = vmatprep.subr.mxu0 0.0
    %653 = vmatpush1.msra.mxu0 0.0
    %654 = vmatprep.subr.mxu0 0.0
    %655 = vmatpush1.msra.mxu0 0.0
    %656 = vmatprep.subr.mxu0 0.0
    %657 = vmatpush1.msra.mxu0 0.0
    %658 = vmatprep.subr.mxu0 0.0
    %659 = vmatpush1.msra.mxu0 0.0
    %660 = vmatprep.subr.mxu0 0.0
    %661 = vmatpush1.msra.mxu0 0.0
    %662 = vmatprep.subr.mxu0 0.0
    %663 = vmatpush1.msra.mxu0 0.0
    %664 = vmatprep.subr.mxu0 0.0
    %665 = vmatpush1.msra.mxu0 0.0
    %666 = vmatprep.subr.mxu0 0.0
    %667 = vmatpush1.msra.mxu0 0.0
    %668 = vmatprep.subr.mxu0 0.0
    %669 = vmatpush1.msra.mxu0 0.0
    %670 = vmatprep.subr.mxu0 0.0
    %671 = vmatpush1.msra.mxu0 0.0
    %672 = vmatprep.subr.mxu0 0.0
    %673 = vmatpush1.msra.mxu0 0.0
    %674 = vmatprep.subr.mxu0 0.0
    %675 = vmatpush1.msra.mxu0 0.0
    %676 = vmatprep.subr.mxu0 0.0
    %677 = vmatpush1.msra.mxu0 0.0
    %678 = vmatprep.subr.mxu0 0.0
    %679 = vmatpush1.msra.mxu0 0.0
    %680 = vmatprep.subr.mxu0 0.0
    %681 = vmatpush1.msra.mxu0 %v641
    %682 = vmatprep.subr.mxu0 0.0
    %683 = vmatpush2.msra.mxu0 0.0
    %684 = vmatprep.subr.mxu0 0.0
    %685 = vmatpush2.msra.mxu0 0.0
    %686 = vmatprep.subr.mxu0 0.0
    %687 = vmatpush2.msra.mxu0 0.0
    %688 = vmatprep.subr.mxu0 0.0
    %689 = vmatpush2.msra.mxu0 0.0
    %690 = vmatprep.subr.mxu0 0.0
    %691 = vmatpush2.msra.mxu0 0.0
    %692 = vmatprep.subr.mxu0 0.0
    %693 = vmatpush2.msra.mxu0 0.0
    %694 = vmatprep.subr.mxu0 0.0
    %695 = vmatpush2.msra.mxu0 0.0
    %696 = vmatprep.subr.mxu0 0.0
    %697 = vmatpush2.msra.mxu0 0.0
    %698 = vmatprep.subr.mxu0 0.0
    %699 = vmatpush2.msra.mxu0 0.0
    %700 = vmatprep.subr.mxu0 0.0
    %701 = vmatpush2.msra.mxu0 0.0
    %702 = vmatprep.subr.mxu0 0.0
    %703 = vmatpush2.msra.mxu0 0.0
    %704 = vmatprep.subr.mxu0 0.0
    %705 = vmatpush2.msra.mxu0 0.0
    %706 = vmatprep.subr.mxu0 0.0
    %707 = vmatpush2.msra.mxu0 0.0
    %708 = vmatprep.subr.mxu0 0.0
    %709 = vmatpush2.msra.mxu0 0.0
    %710 = vmatprep.subr.mxu0 0.0
    %711 = vmatpush2.msra.mxu0 0.0
    %712 = vmatprep.subr.mxu0 0.0
    %713 = vmatpush2.msra.mxu0 0.0
    %714 = vmatprep.mubr.f32.mxu0 0.0
    %715 = vmatmul.mubr.f32.gmra.mxu0 %v646
    %v716 = vpop.f32.mrf.mxu0
    %v717 = vadd.f32 0.0, %v716
    %v718 = vpop.f32.mrf.mxu0
    %719 = vmatprep.mubr.f32.mxu0 0.0
    %720 = vmatmul.mubr.f32.gmra.mxu0 %v648
    %v721 = vpop.f32.mrf.mxu0
    %v722 = vadd.f32 0.0, %v721
    %v723 = vpop.f32.mrf.mxu0
    %724 = vdwg.mxu0
    %v725 = vadd.f32 %v625, %v717
    %v726 = vadd.f32 %v626, %v722
    %v727 = vshra.s32 %v58, 28
    %v728 = vand.u32 %v727, 15
    %v729 = vcvt.s32.f32 %v728
    %v730 = vmul.f32 %v729, %v635
    %v731 = vsub.f32 %v730, %v640
    %732 = vrot.lane.b32.xlu0 %v75, 72
    %v733 = vpop.permute.xlu0 %732
    %734 = vrot.lane.b32.xlu0 %v76, 72
    %v735 = vpop.permute.xlu0 %734
    %v736 = vsel %vm88, %v733, 0
    %v738 = vsel %vm88, %v735, 0
    %740 = vmatprep.subr.mxu0 0.0
    %741 = vmatpush1.msra.mxu0 0.0
    %742 = vmatprep.subr.mxu0 0.0
    %743 = vmatpush1.msra.mxu0 0.0
    %744 = vmatprep.subr.mxu0 0.0
    %745 = vmatpush1.msra.mxu0 0.0
    %746 = vmatprep.subr.mxu0 0.0
    %747 = vmatpush1.msra.mxu0 0.0
    %748 = vmatprep.subr.mxu0 0.0
    %749 = vmatpush1.msra.mxu0 0.0
    %750 = vmatprep.subr.mxu0 0.0
    %751 = vmatpush1.msra.mxu0 0.0
    %752 = vmatprep.subr.mxu0 0.0
    %753 = vmatpush1.msra.mxu0 0.0
    %754 = vmatprep.subr.mxu0 0.0
    %755 = vmatpush1.msra.mxu0 0.0
    %756 = vmatprep.subr.mxu0 0.0
    %757 = vmatpush1.msra.mxu0 0.0
    %758 = vmatprep.subr.mxu0 0.0
    %759 = vmatpush1.msra.mxu0 0.0
    %760 = vmatprep.subr.mxu0 0.0
    %761 = vmatpush1.msra.mxu0 0.0
    %762 = vmatprep.subr.mxu0 0.0
    %763 = vmatpush1.msra.mxu0 0.0
    %764 = vmatprep.subr.mxu0 0.0
    %765 = vmatpush1.msra.mxu0 0.0
    %766 = vmatprep.subr.mxu0 0.0
    %767 = vmatpush1.msra.mxu0 0.0
    %768 = vmatprep.subr.mxu0 0.0
    %769 = vmatpush1.msra.mxu0 0.0
    %770 = vmatprep.subr.mxu0 0.0
    %771 = vmatpush1.msra.mxu0 %v731
    %772 = vmatprep.subr.mxu0 0.0
    %773 = vmatpush2.msra.mxu0 0.0
    %774 = vmatprep.subr.mxu0 0.0
    %775 = vmatpush2.msra.mxu0 0.0
    %776 = vmatprep.subr.mxu0 0.0
    %777 = vmatpush2.msra.mxu0 0.0
    %778 = vmatprep.subr.mxu0 0.0
    %779 = vmatpush2.msra.mxu0 0.0
    %780 = vmatprep.subr.mxu0 0.0
    %781 = vmatpush2.msra.mxu0 0.0
    %782 = vmatprep.subr.mxu0 0.0
    %783 = vmatpush2.msra.mxu0 0.0
    %784 = vmatprep.subr.mxu0 0.0
    %785 = vmatpush2.msra.mxu0 0.0
    %786 = vmatprep.subr.mxu0 0.0
    %787 = vmatpush2.msra.mxu0 0.0
    %788 = vmatprep.subr.mxu0 0.0
    %789 = vmatpush2.msra.mxu0 0.0
    %790 = vmatprep.subr.mxu0 0.0
    %791 = vmatpush2.msra.mxu0 0.0
    %792 = vmatprep.subr.mxu0 0.0
    %793 = vmatpush2.msra.mxu0 0.0
    %794 = vmatprep.subr.mxu0 0.0
    %795 = vmatpush2.msra.mxu0 0.0
    %796 = vmatprep.subr.mxu0 0.0
    %797 = vmatpush2.msra.mxu0 0.0
    %798 = vmatprep.subr.mxu0 0.0
    %799 = vmatpush2.msra.mxu0 0.0
    %800 = vmatprep.subr.mxu0 0.0
    %801 = vmatpush2.msra.mxu0 0.0
    %802 = vmatprep.subr.mxu0 0.0
    %803 = vmatpush2.msra.mxu0 0.0
    %804 = vmatprep.mubr.f32.mxu0 0.0
    %805 = vmatmul.mubr.f32.gmra.mxu0 %v736
    %v806 = vpop.f32.mrf.mxu0
    %v807 = vadd.f32 0.0, %v806
    %v808 = vpop.f32.mrf.mxu0
    %809 = vmatprep.mubr.f32.mxu0 0.0
    %810 = vmatmul.mubr.f32.gmra.mxu0 %v738
    %v811 = vpop.f32.mrf.mxu0
    %v812 = vadd.f32 0.0, %v811
    %v813 = vpop.f32.mrf.mxu0
    %814 = vdwg.mxu0
    %v815 = vadd.f32 %v725, %v807
    %v816 = vadd.f32 %v726, %v812
    %v817 = vld [vmem:[%s4] sm:$0x1]
    %v819 = vlaneseq
    %v820 = vshrl.u32 %v819, 7
    %v821 = vsub.s32 0, %v820
    %v822 = vrot.slane %v817, %v821
    %v824 = vadd.f32 %v815, %v822
    %v825 = vadd.f32 %v816, %v822
    %826 = vst [vmem:[#allocation8] sm:$0xff] %v824
    %827 = vst [vmem:[#allocation8 + $0x8] sm:$0xff] %v825
    // Predicated region
    $region34: #{tpu_custom_call.1} parent=1 // pred_check
      _
    $region35: #{tpu_custom_call.1} parent=1 // pred_check_branch
      %829 = sbr.rel (0) target = $region37
    $region36: #{tpu_custom_call.1} parent=1 // pred_region
      %s831 = ssub.s32 256, 256
      %832 = vsyncadd [#allocation4], %s831
      %s833 = sshll.u32 [#allocation8], 4
      %s834 = int_to_ptr.vmem [resolvable:$true] %s833
      %839 = dma.vmem_to_hbm [thread:$0]  %s834, 256, %s5, [#allocation4], 128, 128, 8
    $region37: #{tpu_custom_call.1} parent=1 // pred_fallthru
      _
    // Predicated region
    $region38: #{tpu_custom_call.1} parent=1 // pred_check
      _
    $region39: #{tpu_custom_call.1} parent=1 // pred_check_branch
      %841 = sbr.rel (0) target = $region41
    $region40: #{tpu_custom_call.1} parent=1 // pred_region
      %842 = dma.done [#allocation4], 256
    $region41: #{tpu_custom_call.1} parent=1 // pred_fallthru
      _
    %843 = vsyncpa [#allocation3], 1
    %844 = vsyncpa [#allocation6], 1
    %845 = vsyncpa [#allocation4], 1

</llo_original>
